<compile_context>
chip_gen: v7x
topology: tpu7x:2x2x1
jax: 0.10.0
libtpu: 0.0.40
codegen_flags: <defaults>
</compile_context>

<pallas_src>
import functools

import jax
import jax.numpy as jnp
from jax.experimental import pallas as pl
from jax.experimental.pallas import tpu as pltpu


def _round_up(n, m):
    return ((n + m - 1) // m) * m


def _choose_tiling(b, max_tm=512):
    """Pick (TM, grid, padded batch): big tiles, but keep grid >= 2 for v7x."""
    b8 = _round_up(b, 8)
    grid_n = max(1, -(-b8 // max_tm))
    if grid_n == 1 and b8 >= 16:
        grid_n = 2  # v7x: keep the "parallel" batch axis shardable over 2 TCs
    tm = _round_up(-(-b8 // grid_n), 8)
    return tm, grid_n, tm * grid_n


def _fused_mlp_kernel(ids_ref, cont_ref, t1_ref, b1_ref, w2_ref, b2_ref, o_ref,
                      *, cont_col):
    # ids_ref : (TM, 3) int32  pre-offset row indices into the fused table T1
    # cont_ref: (TM, 3) f32    continuous scalars
    # t1_ref  : (K_pad, H_pad) fused [emb @ W1-slices ; W1_cont ; zeros] table
    # b1_ref  : (1, H_pad)     w2_ref: (H_pad, N_pad)   b2_ref: (1, N_pad)
    tm = ids_ref.shape[0]
    k_pad = t1_ref.shape[0]
    lanes = jax.lax.broadcasted_iota(jnp.int32, (tm, k_pad), 1)
    ids = ids_ref[...]
    cont = cont_ref[...]

    # Multi-hot indicator for the 3 categorical ids (disjoint offset ranges),
    # plus the 3 continuous scalars scattered into their reserved lanes.
    f = ((lanes == ids[:, 0:1]) | (lanes == ids[:, 1:2]) | (lanes == ids[:, 2:3])
         ).astype(jnp.float32)
    f = f + jnp.where(lanes == cont_col, cont[:, 0:1], 0.0)
    f = f + jnp.where(lanes == cont_col + 1, cont[:, 1:2], 0.0)
    f = f + jnp.where(lanes == cont_col + 2, cont[:, 2:3], 0.0)

    # Layer 1: F @ T1 == gather(emb) @ W1 + cont @ W1_cont  (single MXU matmul)
    h = jnp.dot(f, t1_ref[...], preferred_element_type=jnp.float32) + b1_ref[...]
    h = jnp.maximum(h, 0.0)
    # Layer 2
    o = jnp.dot(h, w2_ref[...], preferred_element_type=jnp.float32) + b2_ref[...]
    o_ref[...] = o.astype(o_ref.dtype)  # (TM, N_pad) lane-dense unmasked store


def _fused_mlp_pallas(ids, cont, t1, b1, w2, b2, *, tm, cont_col):
    b_pad = ids.shape[0]
    k_pad, h_pad = t1.shape
    n_pad = w2.shape[1]
    assert b_pad % tm == 0
    grid = (b_pad // tm,)
    kernel = functools.partial(_fused_mlp_kernel, cont_col=cont_col)
    return pl.pallas_call(
        kernel,
        out_shape=jax.ShapeDtypeStruct((b_pad, n_pad), jnp.float32),
        grid=grid,
        in_specs=[
            pl.BlockSpec((tm, 3), lambda i: (i, 0)),          # ids   (streamed)
            pl.BlockSpec((tm, 3), lambda i: (i, 0)),          # cont  (streamed)
            pl.BlockSpec((k_pad, h_pad), lambda i: (0, 0)),   # T1    (VMEM-resident)
            pl.BlockSpec((1, h_pad), lambda i: (0, 0)),       # b1
            pl.BlockSpec((h_pad, n_pad), lambda i: (0, 0)),   # W2
            pl.BlockSpec((1, n_pad), lambda i: (0, 0)),       # b2
        ],
        out_specs=pl.BlockSpec((tm, n_pad), lambda i: (i, 0)),
        compiler_params=pltpu.CompilerParams(
            dimension_semantics=("parallel",)),               # v7x: 2-TC shard
    )(ids, cont, t1, b1, w2, b2)


class ProjectEncoderPallas:
    SMALL_BATCH = 16  # below this, plain jnp beats pallas_call fixed overhead

    def __init__(self, len_category, len_sub_category, len_industry, dim, key):
        keys = jax.random.split(key, 7)
        self.dim = dim
        # Embedding tables (nn.Embedding default init ~ N(0, 1)).
        self.cat_emb = jax.random.normal(keys[0], (len_category, dim), jnp.float32)
        self.sub_emb = jax.random.normal(keys[1], (len_sub_category, dim), jnp.float32)
        self.ind_emb = jax.random.normal(keys[2], (len_industry, dim), jnp.float32)
        # fc: Linear(3*dim+3, 4*dim) -> ReLU -> Linear(4*dim, dim); weights are
        # stored as (in, out) == transpose of nn.Linear.weight.
        d_in, hidden = 3 * dim + 3, 4 * dim
        s1 = 1.0 / float(d_in) ** 0.5
        s2 = 1.0 / float(hidden) ** 0.5
        self.w1 = jax.random.uniform(keys[3], (d_in, hidden), jnp.float32, -s1, s1)
        self.b1 = jax.random.uniform(keys[4], (1, hidden), jnp.float32, -s1, s1)
        self.w2 = jax.random.uniform(keys[5], (hidden, dim), jnp.float32, -s2, s2)
        self.b2 = jax.random.uniform(keys[6], (1, dim), jnp.float32, -s2, s2)

        # ---- Fused hidden-space table (embedding gather folded into layer 1) ----
        v_total = len_category + len_sub_category + len_industry
        self.cont_col = v_total                       # first continuous lane
        k_real = v_total + 3
        self.k_pad = _round_up(k_real, 128)
        self.h_pad = _round_up(hidden, 128)
        self.n_pad = _round_up(dim, 128)
        hp = jax.lax.Precision.HIGHEST
        t_cat = jnp.dot(self.cat_emb, self.w1[0:dim], precision=hp)
        t_sub = jnp.dot(self.sub_emb, self.w1[dim:2 * dim], precision=hp)
        t_ind = jnp.dot(self.ind_emb, self.w1[2 * dim:3 * dim], precision=hp)
        t1 = jnp.concatenate([t_cat, t_sub, t_ind, self.w1[3 * dim:]], axis=0)
        self.t1_pad = jnp.pad(
            t1, ((0, self.k_pad - k_real), (0, self.h_pad - hidden)))
        self.b1_pad = jnp.pad(self.b1, ((0, 0), (0, self.h_pad - hidden)))
        self.w2_pad = jnp.pad(
            self.w2, ((0, self.h_pad - hidden), (0, self.n_pad - dim)))
        self.b2_pad = jnp.pad(self.b2, ((0, 0), (0, self.n_pad - dim)))
        self.id_offsets = jnp.array(
            [0, len_category, len_category + len_sub_category], jnp.int32)

    # Pure-JAX forward (reference / small-batch / single-project path).
    def _jnp_forward(self, ids, cont):
        fc_in = jnp.concatenate(
            [jnp.take(self.cat_emb, ids[:, 0], axis=0),
             jnp.take(self.sub_emb, ids[:, 1], axis=0),
             jnp.take(self.ind_emb, ids[:, 2], axis=0),
             cont], axis=-1)
        hp = jax.lax.Precision.HIGHEST
        h = jnp.maximum(jnp.dot(fc_in, self.w1, precision=hp) + self.b1, 0.0)
        return jnp.dot(h, self.w2, precision=hp) + self.b2

    def encode_batch(self, ids, cont):
        """ids: (B,3) int32 [category, sub_category, industry]; cont: (B,3) f32."""
        ids = jnp.asarray(ids, jnp.int32)
        cont = jnp.asarray(cont, jnp.float32)
        B = ids.shape[0]
        if B < self.SMALL_BATCH:
            return self._jnp_forward(ids, cont)
        tm, _, b_pad = _choose_tiling(B)
        ids_off = ids + self.id_offsets[None, :]       # rows into fused table T1
        if b_pad != B:
            ids_off = jnp.pad(ids_off, ((0, b_pad - B), (0, 0)))
            cont = jnp.pad(cont, ((0, b_pad - B), (0, 0)))
        out = _fused_mlp_pallas(ids_off, cont, self.t1_pad, self.b1_pad,
                                self.w2_pad, self.b2_pad,
                                tm=tm, cont_col=self.cont_col)
        return out[:B, :self.dim]                      # drop row / lane padding

    def __call__(self, project):
        """Single-project forward, identical semantics to the PyTorch module."""
        (category, sub_category, industry), (avg_score, client_fb, awards) = project
        ids = jnp.stack(
            [jnp.asarray(category, jnp.int32).reshape(()),
             jnp.asarray(sub_category, jnp.int32).reshape(()),
             jnp.asarray(industry, jnp.int32).reshape(())]).reshape(1, 3)
        cont = jnp.stack(
            [jnp.asarray(avg_score, jnp.float32).reshape(()),
             jnp.asarray(client_fb, jnp.float32).reshape(()),
             jnp.asarray(awards, jnp.float32).reshape(())]).reshape(1, 3)
        return self._jnp_forward(ids, cont)[0]         # (dim,)


if __name__ == "__main__":
    key = jax.random.PRNGKey(0)
    pkey, idkey, ckey = jax.random.split(key, 3)

    LEN_CATEGORY, LEN_SUB_CATEGORY, LEN_INDUSTRY, DIM = 10, 12, 8, 32
    enc = ProjectEncoderPallas(LEN_CATEGORY, LEN_SUB_CATEGORY, LEN_INDUSTRY, DIM, pkey)

    # Deterministic batch of projects (B=256 -> TM=128, grid=2 Pallas path).
    B = 256
    maxes = jnp.array([LEN_CATEGORY, LEN_SUB_CATEGORY, LEN_INDUSTRY], jnp.int32)
    ids = jax.random.randint(idkey, (B, 3), 0, maxes, dtype=jnp.int32)
    cont = jax.random.normal(ckey, (B, 3), jnp.float32)

    out = jax.block_until_ready(enc.encode_batch(ids, cont))
    assert out.shape == (B, DIM), out.shape

    # Pure-JAX (highest-precision) reference.  The kernel's MXU f32 dots may
    # use bf16 passes, so compare with a matmul-precision tolerance.
    ref = enc._jnp_forward(ids, cont)
    assert jnp.allclose(out, ref, atol=2e-2, rtol=2e-2), \
        float(jnp.max(jnp.abs(out - ref)))

    # Single-project path (original PyTorch forward semantics).
    project = ((ids[0, 0], ids[0, 1], ids[0, 2]), (cont[0, 0], cont[0, 1], cont[0, 2]))
    single = jax.block_until_ready(enc(project))
    assert single.shape == (DIM,), single.shape
    assert jnp.allclose(single, ref[0], atol=2e-2, rtol=2e-2), \
        float(jnp.max(jnp.abs(single - ref[0])))

    print("KERNEL_OK")
</pallas_src>

<mosaic_0001>
module attributes {stable_mosaic.version = 11 : i64} {
  func.func @_fused_mlp_kernel(%arg0: i32, %arg1: memref<128x3xi32, #tpu.memory_space<vmem>>, %arg2: memref<128x3xf32, #tpu.memory_space<vmem>>, %arg3: memref<128x128xf32, #tpu.memory_space<vmem>>, %arg4: memref<1x128xf32, #tpu.memory_space<vmem>>, %arg5: memref<128x128xf32, #tpu.memory_space<vmem>>, %arg6: memref<1x128xf32, #tpu.memory_space<vmem>>, %arg7: memref<128x128xf32, #tpu.memory_space<vmem>>) attributes {dimension_semantics = [#tpu.dimension_semantics<parallel>], iteration_bounds = array<i64: 2>, scalar_prefetch = 0 : i64, scratch_operands = 0 : i64, tpu.core_type = #tpu.core_type<tc>, window_params = [{transform_indices = @transform_0, window_bounds = array<i64: 128, 3>}, {transform_indices = @transform_1, window_bounds = array<i64: 128, 3>}, {pipeline_mode = #tpu.pipeline_mode<synchronous>, transform_indices = @transform_2, window_bounds = array<i64: 128, 128>}, {pipeline_mode = #tpu.pipeline_mode<synchronous>, transform_indices = @transform_3, window_bounds = array<i64: 1, 128>}, {pipeline_mode = #tpu.pipeline_mode<synchronous>, transform_indices = @transform_4, window_bounds = array<i64: 128, 128>}, {pipeline_mode = #tpu.pipeline_mode<synchronous>, transform_indices = @transform_5, window_bounds = array<i64: 1, 128>}, {transform_indices = @transform_6, window_bounds = array<i64: 128, 128>}]} {
    %0 = tpu.iota {dimensions = array<i32: 1>} : vector<128x128xi32>
    %c0 = arith.constant 0 : index
    %c0_0 = arith.constant 0 : index
    %1 = vector.load %arg1[%c0, %c0_0] : memref<128x3xi32, #tpu.memory_space<vmem>>, vector<128x3xi32>
    %c0_1 = arith.constant 0 : index
    %c0_2 = arith.constant 0 : index
    %2 = vector.load %arg2[%c0_1, %c0_2] : memref<128x3xf32, #tpu.memory_space<vmem>>, vector<128x3xf32>
    %3 = vector.extract_strided_slice %1 {offsets = [0, 0], sizes = [128, 1], strides = [1, 1]} : vector<128x3xi32> to vector<128x1xi32>
    %4 = vector.broadcast %3 : vector<128x1xi32> to vector<128x128xi32>
    %5 = arith.cmpi eq, %0, %4 : vector<128x128xi32>
    %6 = vector.extract_strided_slice %1 {offsets = [0, 1], sizes = [128, 1], strides = [1, 1]} : vector<128x3xi32> to vector<128x1xi32>
    %7 = vector.broadcast %6 : vector<128x1xi32> to vector<128x128xi32>
    %8 = arith.cmpi eq, %0, %7 : vector<128x128xi32>
    %9 = arith.ori %5, %8 : vector<128x128xi1>
    %10 = vector.extract_strided_slice %1 {offsets = [0, 2], sizes = [128, 1], strides = [1, 1]} : vector<128x3xi32> to vector<128x1xi32>
    %11 = vector.broadcast %10 : vector<128x1xi32> to vector<128x128xi32>
    %12 = arith.cmpi eq, %0, %11 : vector<128x128xi32>
    %13 = arith.ori %9, %12 : vector<128x128xi1>
    %14 = arith.extui %13 : vector<128x128xi1> to vector<128x128xi32>
    %15 = arith.sitofp %14 : vector<128x128xi32> to vector<128x128xf32>
    %c30_i32 = arith.constant 30 : i32
    %16 = vector.broadcast %c30_i32 : i32 to vector<128x128xi32>
    %17 = arith.cmpi eq, %0, %16 : vector<128x128xi32>
    %18 = vector.extract_strided_slice %2 {offsets = [0, 0], sizes = [128, 1], strides = [1, 1]} : vector<128x3xf32> to vector<128x1xf32>
    %cst = arith.constant 0.000000e+00 : f32
    %19 = vector.shape_cast %18 : vector<128x1xf32> to vector<128x1xf32>
    %20 = vector.broadcast %19 : vector<128x1xf32> to vector<128x128xf32>
    %21 = vector.broadcast %cst : f32 to vector<128x128xf32>
    %22 = arith.select %17, %20, %21 : vector<128x128xi1>, vector<128x128xf32>
    %23 = arith.addf %15, %22 : vector<128x128xf32>
    %c31_i32 = arith.constant 31 : i32
    %24 = vector.broadcast %c31_i32 : i32 to vector<128x128xi32>
    %25 = arith.cmpi eq, %0, %24 : vector<128x128xi32>
    %26 = vector.extract_strided_slice %2 {offsets = [0, 1], sizes = [128, 1], strides = [1, 1]} : vector<128x3xf32> to vector<128x1xf32>
    %cst_3 = arith.constant 0.000000e+00 : f32
    %27 = vector.shape_cast %26 : vector<128x1xf32> to vector<128x1xf32>
    %28 = vector.broadcast %27 : vector<128x1xf32> to vector<128x128xf32>
    %29 = vector.broadcast %cst_3 : f32 to vector<128x128xf32>
    %30 = arith.select %25, %28, %29 : vector<128x128xi1>, vector<128x128xf32>
    %31 = arith.addf %23, %30 : vector<128x128xf32>
    %c32_i32 = arith.constant 32 : i32
    %32 = vector.broadcast %c32_i32 : i32 to vector<128x128xi32>
    %33 = arith.cmpi eq, %0, %32 : vector<128x128xi32>
    %34 = vector.extract_strided_slice %2 {offsets = [0, 2], sizes = [128, 1], strides = [1, 1]} : vector<128x3xf32> to vector<128x1xf32>
    %cst_4 = arith.constant 0.000000e+00 : f32
    %35 = vector.shape_cast %34 : vector<128x1xf32> to vector<128x1xf32>
    %36 = vector.broadcast %35 : vector<128x1xf32> to vector<128x128xf32>
    %37 = vector.broadcast %cst_4 : f32 to vector<128x128xf32>
    %38 = arith.select %33, %36, %37 : vector<128x128xi1>, vector<128x128xf32>
    %39 = arith.addf %31, %38 : vector<128x128xf32>
    %c0_5 = arith.constant 0 : index
    %c0_6 = arith.constant 0 : index
    %40 = vector.load %arg3[%c0_5, %c0_6] : memref<128x128xf32, #tpu.memory_space<vmem>>, vector<128x128xf32>
    %cst_7 = arith.constant dense<0.000000e+00> : vector<128x128xf32>
    %41 = tpu.matmul %39, %40, %cst_7 {dimension_numbers = #tpu.dot_dimension_numbers<[1], [0], [0], [1], [0, 0, 1, 1], [], []>} : vector<128x128xf32>, vector<128x128xf32>, vector<128x128xf32> -> vector<128x128xf32>
    %c0_8 = arith.constant 0 : index
    %c0_9 = arith.constant 0 : index
    %42 = vector.load %arg4[%c0_8, %c0_9] : memref<1x128xf32, #tpu.memory_space<vmem>>, vector<1x128xf32>
    %43 = vector.broadcast %42 : vector<1x128xf32> to vector<128x128xf32>
    %44 = arith.addf %41, %43 : vector<128x128xf32>
    %cst_10 = arith.constant 0.000000e+00 : f32
    %45 = vector.broadcast %cst_10 : f32 to vector<128x128xf32>
    %46 = arith.maximumf %44, %45 : vector<128x128xf32>
    %c0_11 = arith.constant 0 : index
    %c0_12 = arith.constant 0 : index
    %47 = vector.load %arg5[%c0_11, %c0_12] : memref<128x128xf32, #tpu.memory_space<vmem>>, vector<128x128xf32>
    %cst_13 = arith.constant dense<0.000000e+00> : vector<128x128xf32>
    %48 = tpu.matmul %46, %47, %cst_13 {dimension_numbers = #tpu.dot_dimension_numbers<[1], [0], [0], [1], [0, 0, 1, 1], [], []>} : vector<128x128xf32>, vector<128x128xf32>, vector<128x128xf32> -> vector<128x128xf32>
    %c0_14 = arith.constant 0 : index
    %c0_15 = arith.constant 0 : index
    %49 = vector.load %arg6[%c0_14, %c0_15] : memref<1x128xf32, #tpu.memory_space<vmem>>, vector<1x128xf32>
    %50 = vector.broadcast %49 : vector<1x128xf32> to vector<128x128xf32>
    %51 = arith.addf %48, %50 : vector<128x128xf32>
    %c0_16 = arith.constant 0 : index
    %c0_17 = arith.constant 0 : index
    %52 = vector.load %arg7[%c0_16, %c0_17] : memref<128x128xf32, #tpu.memory_space<vmem>>, vector<128x128xf32>
    tpu.vector_store %arg7[%c0_16, %c0_17], %51 {strides = array<i32>} : memref<128x128xf32, #tpu.memory_space<vmem>>, vector<128x128xf32>,
    return
  }
  func.func @transform_0(%arg0: i32) -> (i32, i32) {
    %c0_i32 = arith.constant 0 : i32
    %c0_i32_0 = arith.constant 0 : i32
    return %arg0, %c0_i32 : i32, i32
  }
  func.func @transform_1(%arg0: i32) -> (i32, i32) {
    %c0_i32 = arith.constant 0 : i32
    %c0_i32_0 = arith.constant 0 : i32
    return %arg0, %c0_i32 : i32, i32
  }
  func.func @transform_2(%arg0: i32) -> (i32, i32) {
    %c0_i32 = arith.constant 0 : i32
    %c0_i32_0 = arith.constant 0 : i32
    %c0_i32_1 = arith.constant 0 : i32
    return %c0_i32, %c0_i32_0 : i32, i32
  }
  func.func @transform_3(%arg0: i32) -> (i32, i32) {
    %c0_i32 = arith.constant 0 : i32
    %c0_i32_0 = arith.constant 0 : i32
    %c0_i32_1 = arith.constant 0 : i32
    return %c0_i32, %c0_i32_0 : i32, i32
  }
  func.func @transform_4(%arg0: i32) -> (i32, i32) {
    %c0_i32 = arith.constant 0 : i32
    %c0_i32_0 = arith.constant 0 : i32
    %c0_i32_1 = arith.constant 0 : i32
    return %c0_i32, %c0_i32_0 : i32, i32
  }
  func.func @transform_5(%arg0: i32) -> (i32, i32) {
    %c0_i32 = arith.constant 0 : i32
    %c0_i32_0 = arith.constant 0 : i32
    %c0_i32_1 = arith.constant 0 : i32
    return %c0_i32, %c0_i32_0 : i32, i32
  }
  func.func @transform_6(%arg0: i32) -> (i32, i32) {
    %c0_i32 = arith.constant 0 : i32
    %c0_i32_0 = arith.constant 0 : i32
    return %arg0, %c0_i32 : i32, i32
  }
}

</mosaic_0001>

<llo_original>
// kernel: tpu_custom_call.1
$region0: #{tpu_custom_call.1}
  #allocation0 [shape = 'u32[]', space=smem, size = 0x4, offset = 0x4, fixed_abs, tag = 'smem constant byte address 0x4 - core index']
  #allocation1 [shape = 'u32[144,128]{1,0:T(1,128)}', space=vmem, size = 0x12000, scoped, tag = 'internal scratch']
  %s0 = inlined_call_operand.vmem [shape: s32[256,3], index: 0, kind: input, shape index: {}]
  %s1 = inlined_call_operand.vmem [shape: f32[256,3], index: 1, kind: input, shape index: {}]
  %s2 = inlined_call_operand.vmem [shape: f32[128,128], index: 2, kind: input, shape index: {}]
  %s3 = inlined_call_operand.vmem [shape: f32[1,128], index: 3, kind: input, shape index: {}]
  %s4 = inlined_call_operand.vmem [shape: f32[128,128], index: 4, kind: input, shape index: {}]
  %s5 = inlined_call_operand.vmem [shape: f32[1,128], index: 5, kind: input, shape index: {}]
  %s6 = inlined_call_operand.hbm [shape: f32[256,128], index: 6, kind: output, shape index: {}]
  %s7 = sld [smem:[#allocation0]]
  $region57: #{tpu_custom_call.1} parent=0
    _
  %s9 = ssub.s32 1, %s7
  %s10 = scalar_select 0, %s9, %s7
  $region1: #{tpu_custom_call.1} parent=0
    #allocation2 [shape = 'u8[131072]{0}', space=vmem, size = 0x20000, scoped, tag = 'output window, operand 0']
    #allocation3 [shape = 's32[2]{0}', space=sflag, size = 0x8, scoped, tag = 'scoped memory for tpu_custom_call.1']
    %11 = vsyncpa [#allocation3], 0
    %s12 = scalar_lea.sflag [#allocation3], 1
    %13 = vsyncpa %s12, 0
    loop: start=0, step=1, limit=4
    $region2: #{tpu_custom_call.1} parent=1 // loop_pre_header
      _
    $region3: #{tpu_custom_call.1} parent=1 // loop_header
      %s15 = sphi 0, %s19
      %p16 = scmp.ge.s32.totalorder %s15, 4
      %s25 = sphi 0, %s27
      %s28 = sphi 0, %s25
      %s29 = sphi 0, %s28
      %s45 = sphi 0, %s29
      %s51 = sphi 0, %s53
      %s54 = sphi 0, %s51
      %s55 = sphi 0, %s54
      %s71 = sphi 0, %s55
      %s75 = sphi 0, %s75
      %s77 = sphi 0, %s75
      %s78 = sphi 0, %s77
      %s92 = sphi 0, %s78
      %s96 = sphi 0, %s96
      %s98 = sphi 0, %s96
      %s99 = sphi 0, %s98
      %s113 = sphi 0, %s99
      %s117 = sphi 0, %s117
      %s119 = sphi 0, %s117
      %s120 = sphi 0, %s119
      %s134 = sphi 0, %s120
      %s138 = sphi 0, %s138
      %s140 = sphi 0, %s138
      %s141 = sphi 0, %s140
      %s155 = sphi 0, %s141
      %s161 = sphi 0, %s163
      %s164 = sphi 0, %s161
      %s165 = sphi 0, %s164
      %s181 = sphi 0, %s165
    $region4: #{tpu_custom_call.1} parent=1 // loop_header_branch
      %18 = sbr.rel (%p16) target = $region8
    $region5: #{tpu_custom_call.1} parent=1 // loop_body
      %s20 = ssub.s32 %s15, 1
      %s21 = ssub.s32 %s15, 2
      %s22 = sadd.s32 %s15, 1
      %s23 = ssub.s32 %s15, %s22
      %p24 = scmp.eq.s32.totalorder %s23, 0
      %s26 = sadd.s32 %s25, 1
      %s27 = scalar_select %p24, %s25, %s26
      %p30 = pneg %p24
      %p31 = scmp.eq.s32.totalorder %s15, 1
      %p32 = por %p30, %p31
      %p33 = scmp.ne.s32.totalorder %s25, %s28
      %p34 = scmp.eq.s32.totalorder %s15, 0
      %p35 = por %p33, %p34
      %p36 = scmp.ne.s32.totalorder %s25, %s28
      %p37 = scmp.eq.s32.totalorder %s20, 1
      %p38 = por %p36, %p37
      %p39 = scmp.ne.s32.totalorder %s28, %s29
      %p40 = scmp.eq.s32.totalorder %s20, 0
      %p41 = por %p39, %p40
      %p42 = scmp.ne.s32.totalorder %s28, %s29
      %p43 = scmp.eq.s32.totalorder %s21, 1
      %p44 = por %p42, %p43
      %p46 = scmp.ne.s32.totalorder %s29, %s45
      %p47 = scmp.eq.s32.totalorder %s21, 0
      %p48 = por %p46, %p47
      %s49 = ssub.s32 %s15, %s22
      %p50 = scmp.eq.s32.totalorder %s49, 0
      %s52 = sadd.s32 %s51, 1
      %s53 = scalar_select %p50, %s51, %s52
      %p56 = pneg %p50
      %p57 = scmp.eq.s32.totalorder %s15, 1
      %p58 = por %p56, %p57
      %p59 = scmp.ne.s32.totalorder %s51, %s54
      %p60 = scmp.eq.s32.totalorder %s15, 0
      %p61 = por %p59, %p60
      %p62 = scmp.ne.s32.totalorder %s51, %s54
      %p63 = scmp.eq.s32.totalorder %s20, 1
      %p64 = por %p62, %p63
      %p65 = scmp.ne.s32.totalorder %s54, %s55
      %p66 = scmp.eq.s32.totalorder %s20, 0
      %p67 = por %p65, %p66
      %p68 = scmp.ne.s32.totalorder %s54, %s55
      %p69 = scmp.eq.s32.totalorder %s21, 1
      %p70 = por %p68, %p69
      %p72 = scmp.ne.s32.totalorder %s55, %s71
      %p73 = scmp.eq.s32.totalorder %s21, 0
      %p74 = por %p72, %p73
      %s76 = sadd.s32 %s75, 1
      %p79 = scmp.eq.s32.totalorder %s15, 1
      %p80 = scmp.ne.s32.totalorder %s75, %s77
      %p81 = scmp.eq.s32.totalorder %s15, 0
      %p82 = por %p80, %p81
      %p83 = scmp.ne.s32.totalorder %s75, %s77
      %p84 = scmp.eq.s32.totalorder %s20, 1
      %p85 = por %p83, %p84
      %p86 = scmp.ne.s32.totalorder %s77, %s78
      %p87 = scmp.eq.s32.totalorder %s20, 0
      %p88 = por %p86, %p87
      %p89 = scmp.ne.s32.totalorder %s77, %s78
      %p90 = scmp.eq.s32.totalorder %s21, 1
      %p91 = por %p89, %p90
      %p93 = scmp.ne.s32.totalorder %s78, %s92
      %p94 = scmp.eq.s32.totalorder %s21, 0
      %p95 = por %p93, %p94
      %s97 = sadd.s32 %s96, 1
      %p100 = scmp.eq.s32.totalorder %s15, 1
      %p101 = scmp.ne.s32.totalorder %s96, %s98
      %p102 = scmp.eq.s32.totalorder %s15, 0
      %p103 = por %p101, %p102
      %p104 = scmp.ne.s32.totalorder %s96, %s98
      %p105 = scmp.eq.s32.totalorder %s20, 1
      %p106 = por %p104, %p105
      %p107 = scmp.ne.s32.totalorder %s98, %s99
      %p108 = scmp.eq.s32.totalorder %s20, 0
      %p109 = por %p107, %p108
      %p110 = scmp.ne.s32.totalorder %s98, %s99
      %p111 = scmp.eq.s32.totalorder %s21, 1
      %p112 = por %p110, %p111
      %p114 = scmp.ne.s32.totalorder %s99, %s113
      %p115 = scmp.eq.s32.totalorder %s21, 0
      %p116 = por %p114, %p115
      %s118 = sadd.s32 %s117, 1
      %p121 = scmp.eq.s32.totalorder %s15, 1
      %p122 = scmp.ne.s32.totalorder %s117, %s119
      %p123 = scmp.eq.s32.totalorder %s15, 0
      %p124 = por %p122, %p123
      %p125 = scmp.ne.s32.totalorder %s117, %s119
      %p126 = scmp.eq.s32.totalorder %s20, 1
      %p127 = por %p125, %p126
      %p128 = scmp.ne.s32.totalorder %s119, %s120
      %p129 = scmp.eq.s32.totalorder %s20, 0
      %p130 = por %p128, %p129
      %p131 = scmp.ne.s32.totalorder %s119, %s120
      %p132 = scmp.eq.s32.totalorder %s21, 1
      %p133 = por %p131, %p132
      %p135 = scmp.ne.s32.totalorder %s120, %s134
      %p136 = scmp.eq.s32.totalorder %s21, 0
      %p137 = por %p135, %p136
      %s139 = sadd.s32 %s138, 1
      %p142 = scmp.eq.s32.totalorder %s15, 1
      %p143 = scmp.ne.s32.totalorder %s138, %s140
      %p144 = scmp.eq.s32.totalorder %s15, 0
      %p145 = por %p143, %p144
      %p146 = scmp.ne.s32.totalorder %s138, %s140
      %p147 = scmp.eq.s32.totalorder %s20, 1
      %p148 = por %p146, %p147
      %p149 = scmp.ne.s32.totalorder %s140, %s141
      %p150 = scmp.eq.s32.totalorder %s20, 0
      %p151 = por %p149, %p150
      %p152 = scmp.ne.s32.totalorder %s140, %s141
      %p153 = scmp.eq.s32.totalorder %s21, 1
      %p154 = por %p152, %p153
      %p156 = scmp.ne.s32.totalorder %s141, %s155
      %p157 = scmp.eq.s32.totalorder %s21, 0
      %p158 = por %p156, %p157
      %s159 = ssub.s32 %s15, %s22
      %p160 = scmp.eq.s32.totalorder %s159, 0
      %s162 = sadd.s32 %s161, 1
      %s163 = scalar_select %p160, %s161, %s162
      %p166 = pneg %p160
      %p167 = scmp.eq.s32.totalorder %s15, 1
      %p168 = por %p166, %p167
      %p169 = scmp.ne.s32.totalorder %s161, %s164
      %p170 = scmp.eq.s32.totalorder %s15, 0
      %p171 = por %p169, %p170
      %p172 = scmp.ne.s32.totalorder %s161, %s164
      %p173 = scmp.eq.s32.totalorder %s20, 1
      %p174 = por %p172, %p173
      %p175 = scmp.ne.s32.totalorder %s164, %s165
      %p176 = scmp.eq.s32.totalorder %s20, 0
      %p177 = por %p175, %p176
      %p178 = scmp.ne.s32.totalorder %s164, %s165
      %p179 = scmp.eq.s32.totalorder %s21, 1
      %p180 = por %p178, %p179
      %p182 = scmp.ne.s32.totalorder %s165, %s181
      %p183 = scmp.eq.s32.totalorder %s21, 0
      %p184 = por %p182, %p183
      %p185 = scmp.le.s32.totalorder 1, %s15
      %p186 = scmp.lt.s32.totalorder %s15, 3
      %p187 = pnand %p185, %p186
      %p188 = pneg %p187
      // Predicated region
      $region9: #{tpu_custom_call.1} parent=5 // pred_check
        _
      $region10: #{tpu_custom_call.1} parent=5 // pred_check_branch
        %190 = sbr.rel (%p187) target = $region12
      $region11: #{tpu_custom_call.1} parent=5 // pred_region
        %s191 = ssub.s32 %s15, 1
        // Predicated region
        $region13: #{tpu_custom_call.1} parent=11 // pred_check
          %p192 = pneg %p88
        $region14: #{tpu_custom_call.1} parent=11 // pred_check_branch
          %194 = sbr.rel (%p192) target = $region16
        $region15: #{tpu_custom_call.1} parent=11 // pred_region
          _
        $region16: #{tpu_custom_call.1} parent=11 // pred_fallthru
          _
        // Predicated region
        $region17: #{tpu_custom_call.1} parent=11 // pred_check
          %p195 = pneg %p109
        $region18: #{tpu_custom_call.1} parent=11 // pred_check_branch
          %197 = sbr.rel (%p195) target = $region20
        $region19: #{tpu_custom_call.1} parent=11 // pred_region
          _
        $region20: #{tpu_custom_call.1} parent=11 // pred_fallthru
          _
        // Predicated region
        $region21: #{tpu_custom_call.1} parent=11 // pred_check
          %p198 = pneg %p130
        $region22: #{tpu_custom_call.1} parent=11 // pred_check_branch
          %200 = sbr.rel (%p198) target = $region24
        $region23: #{tpu_custom_call.1} parent=11 // pred_region
          _
        $region24: #{tpu_custom_call.1} parent=11 // pred_fallthru
          _
        // Predicated region
        $region25: #{tpu_custom_call.1} parent=11 // pred_check
          %p201 = pneg %p151
        $region26: #{tpu_custom_call.1} parent=11 // pred_check_branch
          %203 = sbr.rel (%p201) target = $region28
        $region27: #{tpu_custom_call.1} parent=11 // pred_region
          _
        $region28: #{tpu_custom_call.1} parent=11 // pred_fallthru
          _
      $region12: #{tpu_custom_call.1} parent=5 // pred_fallthru
        _
      %p204 = scmp.lt.s32.totalorder %s15, 2
      // Predicated region
      $region29: #{tpu_custom_call.1} parent=5 // pred_check
        %p205 = pneg %p204
      $region30: #{tpu_custom_call.1} parent=5 // pred_check_branch
        %207 = sbr.rel (%p205) target = $region32
      $region31: #{tpu_custom_call.1} parent=5 // pred_region
        // Predicated region
        $region33: #{tpu_custom_call.1} parent=31 // pred_check
          %p208 = pneg %p35
        $region34: #{tpu_custom_call.1} parent=31 // pred_check_branch
          %210 = sbr.rel (%p208) target = $region36
        $region35: #{tpu_custom_call.1} parent=31 // pred_region
          %s211 = smul.u32 16, %s15
          %p212 = scmp.lt.s32.totalorder %s211, 31
          %s213 = scalar_select %p212, %s211, 31
          %s214 = smul.addr %s213, 8
          %s215 = scalar_lea.vmem %s0, %s214
          %s216 = smul.u32 16, %s15
        $region36: #{tpu_custom_call.1} parent=31 // pred_fallthru
          _
        // Predicated region
        $region37: #{tpu_custom_call.1} parent=31 // pred_check
          %p217 = pneg %p61
        $region38: #{tpu_custom_call.1} parent=31 // pred_check_branch
          %219 = sbr.rel (%p217) target = $region40
        $region39: #{tpu_custom_call.1} parent=31 // pred_region
          %s220 = smul.u32 16, %s15
          %p221 = scmp.lt.s32.totalorder %s220, 31
          %s222 = scalar_select %p221, %s220, 31
          %s223 = smul.addr %s222, 8
          %s224 = scalar_lea.vmem %s1, %s223
          %s225 = smul.u32 16, %s15
        $region40: #{tpu_custom_call.1} parent=31 // pred_fallthru
          _
      $region32: #{tpu_custom_call.1} parent=5 // pred_fallthru
        _
      %p226 = scmp.le.s32.totalorder 1, %s15
      %p227 = scmp.lt.s32.totalorder %s15, 3
      %p228 = pnand %p226, %p227
      %p229 = pneg %p228
      // Predicated region
      $region41: #{tpu_custom_call.1} parent=5 // pred_check
        _
      $region42: #{tpu_custom_call.1} parent=5 // pred_check_branch
        %231 = sbr.rel (%p228) target = $region44
      $region43: #{tpu_custom_call.1} parent=5 // pred_region
        %s232 = ssub.s32 %s15, 1
        %s233 = smul.u32 16, %s20
        %p234 = scmp.lt.s32.totalorder %s233, 31
        %s235 = scalar_select %p234, %s233, 31
        %s236 = smul.addr %s235, 8
        %s237 = scalar_lea.vmem %s0, %s236
        %p238 = pneg %p41
        %p239 = pneg %p38
        %s240 = smul.u32 16, %s20
        %p241 = scmp.lt.s32.totalorder %s240, 31
        %s242 = scalar_select %p241, %s240, 31
        %s243 = smul.addr %s242, 8
        %s244 = scalar_lea.vmem %s1, %s243
        %p245 = pneg %p67
        %p246 = pneg %p64
        %p247 = pneg %p88
        %p248 = pneg %p85
        %p249 = pneg %p109
        %p250 = pneg %p106
        %p251 = pneg %p130
        %p252 = pneg %p127
        %p253 = pneg %p151
        %p254 = pneg %p148
        %p255 = pneg %p177
        %p256 = pneg %p174
        %s257 = sand.u32 %s164, 1
        %s258 = scalar_lea.sflag [#allocation3], %s257
        %s259 = sand.u32 %s164, 1
        %s260 = smul.addr %s259, 128
        %s261 = scalar_lea.vmem [#allocation2], %s260
        %s262 = smul.u32 16, %s20
        %p263 = scmp.lt.s32.totalorder %s262, 31
        %s264 = scalar_select %p263, %s262, 31
        %s265 = smul.addr %s264, 8
        %s266 = scalar_lea.vmem %s0, %s265
        %s267 = smul.u32 16, %s20
        %s268 = smul.u32 16, %s20
        %p269 = scmp.lt.s32.totalorder %s268, 31
        %s270 = scalar_select %p269, %s268, 31
        %s271 = smul.addr %s270, 8
        %s272 = scalar_lea.vmem %s1, %s271
        %s273 = smul.u32 16, %s20
        %s274 = smul.u32 16, %s20
        %v275 = vlaneseq
        %v276 = vand.u32 %v275, 127
        %v277 = vld [vmem:[%s266] sm:$0xff]
        %v278 = vld [vmem:[%s266 + $0x8] sm:$0xff]
        %v279 = vld [vmem:[%s266 + $0x10] sm:$0xff]
        %v280 = vld [vmem:[%s266 + $0x18] sm:$0xff]
        %v281 = vld [vmem:[%s266 + $0x20] sm:$0xff]
        %v282 = vld [vmem:[%s266 + $0x28] sm:$0xff]
        %v283 = vld [vmem:[%s266 + $0x30] sm:$0xff]
        %v284 = vld [vmem:[%s266 + $0x38] sm:$0xff]
        %v285 = vld [vmem:[%s266 + $0x40] sm:$0xff]
        %v286 = vld [vmem:[%s266 + $0x48] sm:$0xff]
        %v287 = vld [vmem:[%s266 + $0x50] sm:$0xff]
        %v288 = vld [vmem:[%s266 + $0x58] sm:$0xff]
        %v289 = vld [vmem:[%s266 + $0x60] sm:$0xff]
        %v290 = vld [vmem:[%s266 + $0x68] sm:$0xff]
        %v291 = vld [vmem:[%s266 + $0x70] sm:$0xff]
        %v292 = vld [vmem:[%s266 + $0x78] sm:$0xff]
        %v293 = vld [vmem:[%s272] sm:$0xff]
        %v294 = vld [vmem:[%s272 + $0x8] sm:$0xff]
        %v295 = vld [vmem:[%s272 + $0x10] sm:$0xff]
        %v296 = vld [vmem:[%s272 + $0x18] sm:$0xff]
        %v297 = vld [vmem:[%s272 + $0x20] sm:$0xff]
        %v298 = vld [vmem:[%s272 + $0x28] sm:$0xff]
        %v299 = vld [vmem:[%s272 + $0x30] sm:$0xff]
        %v300 = vld [vmem:[%s272 + $0x38] sm:$0xff]
        %v301 = vld [vmem:[%s272 + $0x40] sm:$0xff]
        %v302 = vld [vmem:[%s272 + $0x48] sm:$0xff]
        %v303 = vld [vmem:[%s272 + $0x50] sm:$0xff]
        %v304 = vld [vmem:[%s272 + $0x58] sm:$0xff]
        %v305 = vld [vmem:[%s272 + $0x60] sm:$0xff]
        %v306 = vld [vmem:[%s272 + $0x68] sm:$0xff]
        %v307 = vld [vmem:[%s272 + $0x70] sm:$0xff]
        %v308 = vld [vmem:[%s272 + $0x78] sm:$0xff]
        %309 = vset.pattern.permute.xlu0 0
        %310 = vperm.xlu0 %309, %v277
        %v311 = vpop.permute.xlu0 %310
        %312 = vset.pattern.permute.xlu0 0
        %313 = vperm.xlu0 %312, %v278
        %v314 = vpop.permute.xlu0 %313
        %315 = vset.pattern.permute.xlu0 0
        %316 = vperm.xlu0 %315, %v279
        %v317 = vpop.permute.xlu0 %316
        %318 = vset.pattern.permute.xlu0 0
        %319 = vperm.xlu0 %318, %v280
        %v320 = vpop.permute.xlu0 %319
        %321 = vset.pattern.permute.xlu0 0
        %322 = vperm.xlu0 %321, %v281
        %v323 = vpop.permute.xlu0 %322
        %324 = vset.pattern.permute.xlu0 0
        %325 = vperm.xlu0 %324, %v282
        %v326 = vpop.permute.xlu0 %325
        %327 = vset.pattern.permute.xlu0 0
        %328 = vperm.xlu0 %327, %v283
        %v329 = vpop.permute.xlu0 %328
        %330 = vset.pattern.permute.xlu0 0
        %331 = vperm.xlu0 %330, %v284
        %v332 = vpop.permute.xlu0 %331
        %333 = vset.pattern.permute.xlu0 0
        %334 = vperm.xlu0 %333, %v285
        %v335 = vpop.permute.xlu0 %334
        %336 = vset.pattern.permute.xlu0 0
        %337 = vperm.xlu0 %336, %v286
        %v338 = vpop.permute.xlu0 %337
        %339 = vset.pattern.permute.xlu0 0
        %340 = vperm.xlu0 %339, %v287
        %v341 = vpop.permute.xlu0 %340
        %342 = vset.pattern.permute.xlu0 0
        %343 = vperm.xlu0 %342, %v288
        %v344 = vpop.permute.xlu0 %343
        %345 = vset.pattern.permute.xlu0 0
        %346 = vperm.xlu0 %345, %v289
        %v347 = vpop.permute.xlu0 %346
        %348 = vset.pattern.permute.xlu0 0
        %349 = vperm.xlu0 %348, %v290
        %v350 = vpop.permute.xlu0 %349
        %351 = vset.pattern.permute.xlu0 0
        %352 = vperm.xlu0 %351, %v291
        %v353 = vpop.permute.xlu0 %352
        %354 = vset.pattern.permute.xlu0 0
        %355 = vperm.xlu0 %354, %v292
        %v356 = vpop.permute.xlu0 %355
        %vm357 = vcmp.eq.s32.totalorder %v276, %v311
        %vm358 = vcmp.eq.s32.totalorder %v276, %v314
        %vm359 = vcmp.eq.s32.totalorder %v276, %v317
        %vm360 = vcmp.eq.s32.totalorder %v276, %v320
        %vm361 = vcmp.eq.s32.totalorder %v276, %v323
        %vm362 = vcmp.eq.s32.totalorder %v276, %v326
        %vm363 = vcmp.eq.s32.totalorder %v276, %v329
        %vm364 = vcmp.eq.s32.totalorder %v276, %v332
        %vm365 = vcmp.eq.s32.totalorder %v276, %v335
        %vm366 = vcmp.eq.s32.totalorder %v276, %v338
        %vm367 = vcmp.eq.s32.totalorder %v276, %v341
        %vm368 = vcmp.eq.s32.totalorder %v276, %v344
        %vm369 = vcmp.eq.s32.totalorder %v276, %v347
        %vm370 = vcmp.eq.s32.totalorder %v276, %v350
        %vm371 = vcmp.eq.s32.totalorder %v276, %v353
        %vm372 = vcmp.eq.s32.totalorder %v276, %v356
        %373 = vset.pattern.permute.xlu0 1
        %374 = vperm.xlu0 %373, %v277
        %v375 = vpop.permute.xlu0 %374
        %376 = vset.pattern.permute.xlu0 1
        %377 = vperm.xlu0 %376, %v278
        %v378 = vpop.permute.xlu0 %377
        %379 = vset.pattern.permute.xlu0 1
        %380 = vperm.xlu0 %379, %v279
        %v381 = vpop.permute.xlu0 %380
        %382 = vset.pattern.permute.xlu0 1
        %383 = vperm.xlu0 %382, %v280
        %v384 = vpop.permute.xlu0 %383
        %385 = vset.pattern.permute.xlu0 1
        %386 = vperm.xlu0 %385, %v281
        %v387 = vpop.permute.xlu0 %386
        %388 = vset.pattern.permute.xlu0 1
        %389 = vperm.xlu0 %388, %v282
        %v390 = vpop.permute.xlu0 %389
        %391 = vset.pattern.permute.xlu0 1
        %392 = vperm.xlu0 %391, %v283
        %v393 = vpop.permute.xlu0 %392
        %394 = vset.pattern.permute.xlu0 1
        %395 = vperm.xlu0 %394, %v284
        %v396 = vpop.permute.xlu0 %395
        %397 = vset.pattern.permute.xlu0 1
        %398 = vperm.xlu0 %397, %v285
        %v399 = vpop.permute.xlu0 %398
        %400 = vset.pattern.permute.xlu0 1
        %401 = vperm.xlu0 %400, %v286
        %v402 = vpop.permute.xlu0 %401
        %403 = vset.pattern.permute.xlu0 1
        %404 = vperm.xlu0 %403, %v287
        %v405 = vpop.permute.xlu0 %404
        %406 = vset.pattern.permute.xlu0 1
        %407 = vperm.xlu0 %406, %v288
        %v408 = vpop.permute.xlu0 %407
        %409 = vset.pattern.permute.xlu0 1
        %410 = vperm.xlu0 %409, %v289
        %v411 = vpop.permute.xlu0 %410
        %412 = vset.pattern.permute.xlu0 1
        %413 = vperm.xlu0 %412, %v290
        %v414 = vpop.permute.xlu0 %413
        %415 = vset.pattern.permute.xlu0 1
        %416 = vperm.xlu0 %415, %v291
        %v417 = vpop.permute.xlu0 %416
        %418 = vset.pattern.permute.xlu0 1
        %419 = vperm.xlu0 %418, %v292
        %v420 = vpop.permute.xlu0 %419
        %vm421 = vcmp.eq.s32.totalorder %v276, %v375
        %vm422 = vcmp.eq.s32.totalorder %v276, %v378
        %vm423 = vcmp.eq.s32.totalorder %v276, %v381
        %vm424 = vcmp.eq.s32.totalorder %v276, %v384
        %vm425 = vcmp.eq.s32.totalorder %v276, %v387
        %vm426 = vcmp.eq.s32.totalorder %v276, %v390
        %vm427 = vcmp.eq.s32.totalorder %v276, %v393
        %vm428 = vcmp.eq.s32.totalorder %v276, %v396
        %vm429 = vcmp.eq.s32.totalorder %v276, %v399
        %vm430 = vcmp.eq.s32.totalorder %v276, %v402
        %vm431 = vcmp.eq.s32.totalorder %v276, %v405
        %vm432 = vcmp.eq.s32.totalorder %v276, %v408
        %vm433 = vcmp.eq.s32.totalorder %v276, %v411
        %vm434 = vcmp.eq.s32.totalorder %v276, %v414
        %vm435 = vcmp.eq.s32.totalorder %v276, %v417
        %vm436 = vcmp.eq.s32.totalorder %v276, %v420
        %vm437 = vmor %vm357, %vm421
        %vm438 = vmor %vm358, %vm422
        %vm439 = vmor %vm359, %vm423
        %vm440 = vmor %vm360, %vm424
        %vm441 = vmor %vm361, %vm425
        %vm442 = vmor %vm362, %vm426
        %vm443 = vmor %vm363, %vm427
        %vm444 = vmor %vm364, %vm428
        %vm445 = vmor %vm365, %vm429
        %vm446 = vmor %vm366, %vm430
        %vm447 = vmor %vm367, %vm431
        %vm448 = vmor %vm368, %vm432
        %vm449 = vmor %vm369, %vm433
        %vm450 = vmor %vm370, %vm434
        %vm451 = vmor %vm371, %vm435
        %vm452 = vmor %vm372, %vm436
        %453 = vset.pattern.permute.xlu0 2
        %454 = vperm.xlu0 %453, %v277
        %v455 = vpop.permute.xlu0 %454
        %456 = vset.pattern.permute.xlu0 2
        %457 = vperm.xlu0 %456, %v278
        %v458 = vpop.permute.xlu0 %457
        %459 = vset.pattern.permute.xlu0 2
        %460 = vperm.xlu0 %459, %v279
        %v461 = vpop.permute.xlu0 %460
        %462 = vset.pattern.permute.xlu0 2
        %463 = vperm.xlu0 %462, %v280
        %v464 = vpop.permute.xlu0 %463
        %465 = vset.pattern.permute.xlu0 2
        %466 = vperm.xlu0 %465, %v281
        %v467 = vpop.permute.xlu0 %466
        %468 = vset.pattern.permute.xlu0 2
        %469 = vperm.xlu0 %468, %v282
        %v470 = vpop.permute.xlu0 %469
        %471 = vset.pattern.permute.xlu0 2
        %472 = vperm.xlu0 %471, %v283
        %v473 = vpop.permute.xlu0 %472
        %474 = vset.pattern.permute.xlu0 2
        %475 = vperm.xlu0 %474, %v284
        %v476 = vpop.permute.xlu0 %475
        %477 = vset.pattern.permute.xlu0 2
        %478 = vperm.xlu0 %477, %v285
        %v479 = vpop.permute.xlu0 %478
        %480 = vset.pattern.permute.xlu0 2
        %481 = vperm.xlu0 %480, %v286
        %v482 = vpop.permute.xlu0 %481
        %483 = vset.pattern.permute.xlu0 2
        %484 = vperm.xlu0 %483, %v287
        %v485 = vpop.permute.xlu0 %484
        %486 = vset.pattern.permute.xlu0 2
        %487 = vperm.xlu0 %486, %v288
        %v488 = vpop.permute.xlu0 %487
        %489 = vset.pattern.permute.xlu0 2
        %490 = vperm.xlu0 %489, %v289
        %v491 = vpop.permute.xlu0 %490
        %492 = vset.pattern.permute.xlu0 2
        %493 = vperm.xlu0 %492, %v290
        %v494 = vpop.permute.xlu0 %493
        %495 = vset.pattern.permute.xlu0 2
        %496 = vperm.xlu0 %495, %v291
        %v497 = vpop.permute.xlu0 %496
        %498 = vset.pattern.permute.xlu0 2
        %499 = vperm.xlu0 %498, %v292
        %v500 = vpop.permute.xlu0 %499
        %vm501 = vcmp.eq.s32.totalorder %v276, %v455
        %vm502 = vcmp.eq.s32.totalorder %v276, %v458
        %vm503 = vcmp.eq.s32.totalorder %v276, %v461
        %vm504 = vcmp.eq.s32.totalorder %v276, %v464
        %vm505 = vcmp.eq.s32.totalorder %v276, %v467
        %vm506 = vcmp.eq.s32.totalorder %v276, %v470
        %vm507 = vcmp.eq.s32.totalorder %v276, %v473
        %vm508 = vcmp.eq.s32.totalorder %v276, %v476
        %vm509 = vcmp.eq.s32.totalorder %v276, %v479
        %vm510 = vcmp.eq.s32.totalorder %v276, %v482
        %vm511 = vcmp.eq.s32.totalorder %v276, %v485
        %vm512 = vcmp.eq.s32.totalorder %v276, %v488
        %vm513 = vcmp.eq.s32.totalorder %v276, %v491
        %vm514 = vcmp.eq.s32.totalorder %v276, %v494
        %vm515 = vcmp.eq.s32.totalorder %v276, %v497
        %vm516 = vcmp.eq.s32.totalorder %v276, %v500
        %vm517 = vmor %vm437, %vm501
        %vm518 = vmor %vm438, %vm502
        %vm519 = vmor %vm439, %vm503
        %vm520 = vmor %vm440, %vm504
        %vm521 = vmor %vm441, %vm505
        %vm522 = vmor %vm442, %vm506
        %vm523 = vmor %vm443, %vm507
        %vm524 = vmor %vm444, %vm508
        %vm525 = vmor %vm445, %vm509
        %vm526 = vmor %vm446, %vm510
        %vm527 = vmor %vm447, %vm511
        %vm528 = vmor %vm448, %vm512
        %vm529 = vmor %vm449, %vm513
        %vm530 = vmor %vm450, %vm514
        %vm531 = vmor %vm451, %vm515
        %vm532 = vmor %vm452, %vm516
        %v533 = vsel %vm517, 1, 0
        %v534 = vsel %vm518, 1, 0
        %v535 = vsel %vm519, 1, 0
        %v536 = vsel %vm520, 1, 0
        %v537 = vsel %vm521, 1, 0
        %v538 = vsel %vm522, 1, 0
        %v539 = vsel %vm523, 1, 0
        %v540 = vsel %vm524, 1, 0
        %v541 = vsel %vm525, 1, 0
        %v542 = vsel %vm526, 1, 0
        %v543 = vsel %vm527, 1, 0
        %v544 = vsel %vm528, 1, 0
        %v545 = vsel %vm529, 1, 0
        %v546 = vsel %vm530, 1, 0
        %v547 = vsel %vm531, 1, 0
        %v548 = vsel %vm532, 1, 0
        %v549 = vcvt.s32.f32 %v533
        %v550 = vcvt.s32.f32 %v534
        %v551 = vcvt.s32.f32 %v535
        %v552 = vcvt.s32.f32 %v536
        %v553 = vcvt.s32.f32 %v537
        %v554 = vcvt.s32.f32 %v538
        %v555 = vcvt.s32.f32 %v539
        %v556 = vcvt.s32.f32 %v540
        %v557 = vcvt.s32.f32 %v541
        %v558 = vcvt.s32.f32 %v542
        %v559 = vcvt.s32.f32 %v543
        %v560 = vcvt.s32.f32 %v544
        %v561 = vcvt.s32.f32 %v545
        %v562 = vcvt.s32.f32 %v546
        %v563 = vcvt.s32.f32 %v547
        %v564 = vcvt.s32.f32 %v548
        %vm565 = vcmp.eq.s32.totalorder %v276, 30
        %567 = vset.pattern.permute.xlu0 0
        %568 = vperm.xlu0 %567, %v293
        %v569 = vpop.permute.xlu0 %568
        %572 = vset.pattern.permute.xlu0 0
        %573 = vperm.xlu0 %572, %v294
        %v574 = vpop.permute.xlu0 %573
        %577 = vset.pattern.permute.xlu0 0
        %578 = vperm.xlu0 %577, %v295
        %v579 = vpop.permute.xlu0 %578
        %582 = vset.pattern.permute.xlu0 0
        %583 = vperm.xlu0 %582, %v296
        %v584 = vpop.permute.xlu0 %583
        %587 = vset.pattern.permute.xlu0 0
        %588 = vperm.xlu0 %587, %v297
        %v589 = vpop.permute.xlu0 %588
        %592 = vset.pattern.permute.xlu0 0
        %593 = vperm.xlu0 %592, %v298
        %v594 = vpop.permute.xlu0 %593
        %597 = vset.pattern.permute.xlu0 0
        %598 = vperm.xlu0 %597, %v299
        %v599 = vpop.permute.xlu0 %598
        %602 = vset.pattern.permute.xlu0 0
        %603 = vperm.xlu0 %602, %v300
        %v604 = vpop.permute.xlu0 %603
        %607 = vset.pattern.permute.xlu0 0
        %608 = vperm.xlu0 %607, %v301
        %v609 = vpop.permute.xlu0 %608
        %612 = vset.pattern.permute.xlu0 0
        %613 = vperm.xlu0 %612, %v302
        %v614 = vpop.permute.xlu0 %613
        %617 = vset.pattern.permute.xlu0 0
        %618 = vperm.xlu0 %617, %v303
        %v619 = vpop.permute.xlu0 %618
        %622 = vset.pattern.permute.xlu0 0
        %623 = vperm.xlu0 %622, %v304
        %v624 = vpop.permute.xlu0 %623
        %627 = vset.pattern.permute.xlu0 0
        %628 = vperm.xlu0 %627, %v305
        %v629 = vpop.permute.xlu0 %628
        %632 = vset.pattern.permute.xlu0 0
        %633 = vperm.xlu0 %632, %v306
        %v634 = vpop.permute.xlu0 %633
        %637 = vset.pattern.permute.xlu0 0
        %638 = vperm.xlu0 %637, %v307
        %v639 = vpop.permute.xlu0 %638
        %642 = vset.pattern.permute.xlu0 0
        %643 = vperm.xlu0 %642, %v308
        %v644 = vpop.permute.xlu0 %643
        %v646 = vsel %vm565, %v569, 0.0
        %v647 = vsel %vm565, %v574, 0.0
        %v648 = vsel %vm565, %v579, 0.0
        %v649 = vsel %vm565, %v584, 0.0
        %v650 = vsel %vm565, %v589, 0.0
        %v651 = vsel %vm565, %v594, 0.0
        %v652 = vsel %vm565, %v599, 0.0
        %v653 = vsel %vm565, %v604, 0.0
        %v654 = vsel %vm565, %v609, 0.0
        %v655 = vsel %vm565, %v614, 0.0
        %v656 = vsel %vm565, %v619, 0.0
        %v657 = vsel %vm565, %v624, 0.0
        %v658 = vsel %vm565, %v629, 0.0
        %v659 = vsel %vm565, %v634, 0.0
        %v660 = vsel %vm565, %v639, 0.0
        %v661 = vsel %vm565, %v644, 0.0
        %v662 = vadd.f32 %v549, %v646
        %v663 = vadd.f32 %v550, %v647
        %v664 = vadd.f32 %v551, %v648
        %v665 = vadd.f32 %v552, %v649
        %v666 = vadd.f32 %v553, %v650
        %v667 = vadd.f32 %v554, %v651
        %v668 = vadd.f32 %v555, %v652
        %v669 = vadd.f32 %v556, %v653
        %v670 = vadd.f32 %v557, %v654
        %v671 = vadd.f32 %v558, %v655
        %v672 = vadd.f32 %v559, %v656
        %v673 = vadd.f32 %v560, %v657
        %v674 = vadd.f32 %v561, %v658
        %v675 = vadd.f32 %v562, %v659
        %v676 = vadd.f32 %v563, %v660
        %v677 = vadd.f32 %v564, %v661
        %vm678 = vcmp.eq.s32.totalorder %v276, 31
        %679 = vset.pattern.permute.xlu0 1
        %680 = vperm.xlu0 %679, %v293
        %v681 = vpop.permute.xlu0 %680
        %683 = vset.pattern.permute.xlu0 1
        %684 = vperm.xlu0 %683, %v294
        %v685 = vpop.permute.xlu0 %684
        %687 = vset.pattern.permute.xlu0 1
        %688 = vperm.xlu0 %687, %v295
        %v689 = vpop.permute.xlu0 %688
        %691 = vset.pattern.permute.xlu0 1
        %692 = vperm.xlu0 %691, %v296
        %v693 = vpop.permute.xlu0 %692
        %695 = vset.pattern.permute.xlu0 1
        %696 = vperm.xlu0 %695, %v297
        %v697 = vpop.permute.xlu0 %696
        %699 = vset.pattern.permute.xlu0 1
        %700 = vperm.xlu0 %699, %v298
        %v701 = vpop.permute.xlu0 %700
        %703 = vset.pattern.permute.xlu0 1
        %704 = vperm.xlu0 %703, %v299
        %v705 = vpop.permute.xlu0 %704
        %707 = vset.pattern.permute.xlu0 1
        %708 = vperm.xlu0 %707, %v300
        %v709 = vpop.permute.xlu0 %708
        %711 = vset.pattern.permute.xlu0 1
        %712 = vperm.xlu0 %711, %v301
        %v713 = vpop.permute.xlu0 %712
        %715 = vset.pattern.permute.xlu0 1
        %716 = vperm.xlu0 %715, %v302
        %v717 = vpop.permute.xlu0 %716
        %719 = vset.pattern.permute.xlu0 1
        %720 = vperm.xlu0 %719, %v303
        %v721 = vpop.permute.xlu0 %720
        %723 = vset.pattern.permute.xlu0 1
        %724 = vperm.xlu0 %723, %v304
        %v725 = vpop.permute.xlu0 %724
        %727 = vset.pattern.permute.xlu0 1
        %728 = vperm.xlu0 %727, %v305
        %v729 = vpop.permute.xlu0 %728
        %731 = vset.pattern.permute.xlu0 1
        %732 = vperm.xlu0 %731, %v306
        %v733 = vpop.permute.xlu0 %732
        %735 = vset.pattern.permute.xlu0 1
        %736 = vperm.xlu0 %735, %v307
        %v737 = vpop.permute.xlu0 %736
        %739 = vset.pattern.permute.xlu0 1
        %740 = vperm.xlu0 %739, %v308
        %v741 = vpop.permute.xlu0 %740
        %v743 = vsel %vm678, %v681, 0.0
        %v744 = vsel %vm678, %v685, 0.0
        %v745 = vsel %vm678, %v689, 0.0
        %v746 = vsel %vm678, %v693, 0.0
        %v747 = vsel %vm678, %v697, 0.0
        %v748 = vsel %vm678, %v701, 0.0
        %v749 = vsel %vm678, %v705, 0.0
        %v750 = vsel %vm678, %v709, 0.0
        %v751 = vsel %vm678, %v713, 0.0
        %v752 = vsel %vm678, %v717, 0.0
        %v753 = vsel %vm678, %v721, 0.0
        %v754 = vsel %vm678, %v725, 0.0
        %v755 = vsel %vm678, %v729, 0.0
        %v756 = vsel %vm678, %v733, 0.0
        %v757 = vsel %vm678, %v737, 0.0
        %v758 = vsel %vm678, %v741, 0.0
        %v759 = vadd.f32 %v662, %v743
        %v760 = vadd.f32 %v663, %v744
        %v761 = vadd.f32 %v664, %v745
        %v762 = vadd.f32 %v665, %v746
        %v763 = vadd.f32 %v666, %v747
        %v764 = vadd.f32 %v667, %v748
        %v765 = vadd.f32 %v668, %v749
        %v766 = vadd.f32 %v669, %v750
        %v767 = vadd.f32 %v670, %v751
        %v768 = vadd.f32 %v671, %v752
        %v769 = vadd.f32 %v672, %v753
        %v770 = vadd.f32 %v673, %v754
        %v771 = vadd.f32 %v674, %v755
        %v772 = vadd.f32 %v675, %v756
        %v773 = vadd.f32 %v676, %v757
        %v774 = vadd.f32 %v677, %v758
        %vm775 = vcmp.eq.s32.totalorder %v276, 32
        %776 = vset.pattern.permute.xlu0 2
        %777 = vperm.xlu0 %776, %v293
        %v778 = vpop.permute.xlu0 %777
        %780 = vset.pattern.permute.xlu0 2
        %781 = vperm.xlu0 %780, %v294
        %v782 = vpop.permute.xlu0 %781
        %784 = vset.pattern.permute.xlu0 2
        %785 = vperm.xlu0 %784, %v295
        %v786 = vpop.permute.xlu0 %785
        %788 = vset.pattern.permute.xlu0 2
        %789 = vperm.xlu0 %788, %v296
        %v790 = vpop.permute.xlu0 %789
        %792 = vset.pattern.permute.xlu0 2
        %793 = vperm.xlu0 %792, %v297
        %v794 = vpop.permute.xlu0 %793
        %796 = vset.pattern.permute.xlu0 2
        %797 = vperm.xlu0 %796, %v298
        %v798 = vpop.permute.xlu0 %797
        %800 = vset.pattern.permute.xlu0 2
        %801 = vperm.xlu0 %800, %v299
        %v802 = vpop.permute.xlu0 %801
        %804 = vset.pattern.permute.xlu0 2
        %805 = vperm.xlu0 %804, %v300
        %v806 = vpop.permute.xlu0 %805
        %808 = vset.pattern.permute.xlu0 2
        %809 = vperm.xlu0 %808, %v301
        %v810 = vpop.permute.xlu0 %809
        %812 = vset.pattern.permute.xlu0 2
        %813 = vperm.xlu0 %812, %v302
        %v814 = vpop.permute.xlu0 %813
        %816 = vset.pattern.permute.xlu0 2
        %817 = vperm.xlu0 %816, %v303
        %v818 = vpop.permute.xlu0 %817
        %820 = vset.pattern.permute.xlu0 2
        %821 = vperm.xlu0 %820, %v304
        %v822 = vpop.permute.xlu0 %821
        %824 = vset.pattern.permute.xlu0 2
        %825 = vperm.xlu0 %824, %v305
        %v826 = vpop.permute.xlu0 %825
        %828 = vset.pattern.permute.xlu0 2
        %829 = vperm.xlu0 %828, %v306
        %v830 = vpop.permute.xlu0 %829
        %832 = vset.pattern.permute.xlu0 2
        %833 = vperm.xlu0 %832, %v307
        %v834 = vpop.permute.xlu0 %833
        %836 = vset.pattern.permute.xlu0 2
        %837 = vperm.xlu0 %836, %v308
        %v838 = vpop.permute.xlu0 %837
        %v840 = vsel %vm775, %v778, 0.0
        %v841 = vsel %vm775, %v782, 0.0
        %v842 = vsel %vm775, %v786, 0.0
        %v843 = vsel %vm775, %v790, 0.0
        %v844 = vsel %vm775, %v794, 0.0
        %v845 = vsel %vm775, %v798, 0.0
        %v846 = vsel %vm775, %v802, 0.0
        %v847 = vsel %vm775, %v806, 0.0
        %v848 = vsel %vm775, %v810, 0.0
        %v849 = vsel %vm775, %v814, 0.0
        %v850 = vsel %vm775, %v818, 0.0
        %v851 = vsel %vm775, %v822, 0.0
        %v852 = vsel %vm775, %v826, 0.0
        %v853 = vsel %vm775, %v830, 0.0
        %v854 = vsel %vm775, %v834, 0.0
        %v855 = vsel %vm775, %v838, 0.0
        %v856 = vadd.f32 %v759, %v840
        %v857 = vadd.f32 %v760, %v841
        %v858 = vadd.f32 %v761, %v842
        %v859 = vadd.f32 %v762, %v843
        %v860 = vadd.f32 %v763, %v844
        %v861 = vadd.f32 %v764, %v845
        %v862 = vadd.f32 %v765, %v846
        %v863 = vadd.f32 %v766, %v847
        %v864 = vadd.f32 %v767, %v848
        %v865 = vadd.f32 %v768, %v849
        %v866 = vadd.f32 %v769, %v850
        %v867 = vadd.f32 %v770, %v851
        %v868 = vadd.f32 %v771, %v852
        %v869 = vadd.f32 %v772, %v853
        %v870 = vadd.f32 %v773, %v854
        %v871 = vadd.f32 %v774, %v855
        %v872 = vld [vmem:[%s2] sm:$0xff]
        %v873 = vld [vmem:[%s2 + $0x8] sm:$0xff]
        %v874 = vld [vmem:[%s2 + $0x10] sm:$0xff]
        %v875 = vld [vmem:[%s2 + $0x18] sm:$0xff]
        %v876 = vld [vmem:[%s2 + $0x20] sm:$0xff]
        %v877 = vld [vmem:[%s2 + $0x28] sm:$0xff]
        %v878 = vld [vmem:[%s2 + $0x30] sm:$0xff]
        %v879 = vld [vmem:[%s2 + $0x38] sm:$0xff]
        %v880 = vld [vmem:[%s2 + $0x40] sm:$0xff]
        %v881 = vld [vmem:[%s2 + $0x48] sm:$0xff]
        %v882 = vld [vmem:[%s2 + $0x50] sm:$0xff]
        %v883 = vld [vmem:[%s2 + $0x58] sm:$0xff]
        %v884 = vld [vmem:[%s2 + $0x60] sm:$0xff]
        %v885 = vld [vmem:[%s2 + $0x68] sm:$0xff]
        %v886 = vld [vmem:[%s2 + $0x70] sm:$0xff]
        %v887 = vld [vmem:[%s2 + $0x78] sm:$0xff]
        %v888 = vld [vmem:[%s3] sm:$0x1]
        %v890 = vlaneseq
        %v891 = vshrl.u32 %v890, 7
        %v892 = vsub.s32 0, %v891
        %v893 = vrot.slane %v888, %v892
        %895 = vmatprep.subr.mxu0 0.0
        %896 = vmatpush1.msra.mxu0 %v872
        %897 = vmatprep.subr.mxu0 0.0
        %898 = vmatpush1.msra.mxu0 %v873
        %899 = vmatprep.subr.mxu0 0.0
        %900 = vmatpush1.msra.mxu0 %v874
        %901 = vmatprep.subr.mxu0 0.0
        %902 = vmatpush1.msra.mxu0 %v875
        %903 = vmatprep.subr.mxu0 0.0
        %904 = vmatpush1.msra.mxu0 %v876
        %905 = vmatprep.subr.mxu0 0.0
        %906 = vmatpush1.msra.mxu0 %v877
        %907 = vmatprep.subr.mxu0 0.0
        %908 = vmatpush1.msra.mxu0 %v878
        %909 = vmatprep.subr.mxu0 0.0
        %910 = vmatpush1.msra.mxu0 %v879
        %911 = vmatprep.subr.mxu0 0.0
        %912 = vmatpush1.msra.mxu0 %v880
        %913 = vmatprep.subr.mxu0 0.0
        %914 = vmatpush1.msra.mxu0 %v881
        %915 = vmatprep.subr.mxu0 0.0
        %916 = vmatpush1.msra.mxu0 %v882
        %917 = vmatprep.subr.mxu0 0.0
        %918 = vmatpush1.msra.mxu0 %v883
        %919 = vmatprep.subr.mxu0 0.0
        %920 = vmatpush1.msra.mxu0 %v884
        %921 = vmatprep.subr.mxu0 0.0
        %922 = vmatpush1.msra.mxu0 %v885
        %923 = vmatprep.subr.mxu0 0.0
        %924 = vmatpush1.msra.mxu0 %v886
        %925 = vmatprep.subr.mxu0 0.0
        %926 = vmatpush1.msra.mxu0 %v887
        %927 = vmatprep.subr.mxu0 0.0
        %928 = vmatpush1.msra.mxu0 0.0
        %929 = vmatprep.subr.mxu0 0.0
        %930 = vmatpush1.msra.mxu0 0.0
        %931 = vmatprep.subr.mxu0 0.0
        %932 = vmatpush1.msra.mxu0 0.0
        %933 = vmatprep.subr.mxu0 0.0
        %934 = vmatpush1.msra.mxu0 0.0
        %935 = vmatprep.subr.mxu0 0.0
        %936 = vmatpush1.msra.mxu0 0.0
        %937 = vmatprep.subr.mxu0 0.0
        %938 = vmatpush1.msra.mxu0 0.0
        %939 = vmatprep.subr.mxu0 0.0
        %940 = vmatpush1.msra.mxu0 0.0
        %941 = vmatprep.subr.mxu0 0.0
        %942 = vmatpush1.msra.mxu0 0.0
        %943 = vmatprep.subr.mxu0 0.0
        %944 = vmatpush1.msra.mxu0 0.0
        %945 = vmatprep.subr.mxu0 0.0
        %946 = vmatpush1.msra.mxu0 0.0
        %947 = vmatprep.subr.mxu0 0.0
        %948 = vmatpush1.msra.mxu0 0.0
        %949 = vmatprep.subr.mxu0 0.0
        %950 = vmatpush1.msra.mxu0 0.0
        %951 = vmatprep.subr.mxu0 0.0
        %952 = vmatpush1.msra.mxu0 0.0
        %953 = vmatprep.subr.mxu0 0.0
        %954 = vmatpush1.msra.mxu0 0.0
        %955 = vmatprep.subr.mxu0 0.0
        %956 = vmatpush1.msra.mxu0 0.0
        %957 = vmatprep.subr.mxu0 0.0
        %958 = vmatpush1.msra.mxu0 0.0
        %959 = vmatprep.mubr.f32.mxu0 0.0
        %960 = vmatmul.mubr.f32.gmra.mrb[0].mxu0 %v856
        %v961 = vpop.f32.mrb[0].mxu0
        %v962 = vadd.f32 %v893, %v961
        %v963 = vpop.f32.mrb[0].mxu0
        %964 = vmatprep.mubr.f32.mxu0 0.0
        %965 = vmatmul.mubr.f32.gmra.mrb[0].mxu0 %v857
        %v966 = vpop.f32.mrb[0].mxu0
        %v967 = vadd.f32 %v893, %v966
        %v968 = vpop.f32.mrb[0].mxu0
        %969 = vmatprep.mubr.f32.mxu0 0.0
        %970 = vmatmul.mubr.f32.gmra.mrb[0].mxu0 %v858
        %v971 = vpop.f32.mrb[0].mxu0
        %v972 = vadd.f32 %v893, %v971
        %v973 = vpop.f32.mrb[0].mxu0
        %974 = vmatprep.mubr.f32.mxu0 0.0
        %975 = vmatmul.mubr.f32.gmra.mrb[0].mxu0 %v859
        %v976 = vpop.f32.mrb[0].mxu0
        %v977 = vadd.f32 %v893, %v976
        %v978 = vpop.f32.mrb[0].mxu0
        %979 = vmatprep.mubr.f32.mxu0 0.0
        %980 = vmatmul.mubr.f32.gmra.mrb[0].mxu0 %v860
        %v981 = vpop.f32.mrb[0].mxu0
        %v982 = vadd.f32 %v893, %v981
        %v983 = vpop.f32.mrb[0].mxu0
        %984 = vmatprep.mubr.f32.mxu0 0.0
        %985 = vmatmul.mubr.f32.gmra.mrb[0].mxu0 %v861
        %v986 = vpop.f32.mrb[0].mxu0
        %v987 = vadd.f32 %v893, %v986
        %v988 = vpop.f32.mrb[0].mxu0
        %989 = vmatprep.mubr.f32.mxu0 0.0
        %990 = vmatmul.mubr.f32.gmra.mrb[0].mxu0 %v862
        %v991 = vpop.f32.mrb[0].mxu0
        %v992 = vadd.f32 %v893, %v991
        %v993 = vpop.f32.mrb[0].mxu0
        %994 = vmatprep.mubr.f32.mxu0 0.0
        %995 = vmatmul.mubr.f32.gmra.mrb[0].mxu0 %v863
        %v996 = vpop.f32.mrb[0].mxu0
        %v997 = vadd.f32 %v893, %v996
        %v998 = vpop.f32.mrb[0].mxu0
        %999 = vmatprep.mubr.f32.mxu0 0.0
        %1000 = vmatmul.mubr.f32.gmra.mrb[0].mxu0 %v864
        %v1001 = vpop.f32.mrb[0].mxu0
        %v1002 = vadd.f32 %v893, %v1001
        %v1003 = vpop.f32.mrb[0].mxu0
        %1004 = vmatprep.mubr.f32.mxu0 0.0
        %1005 = vmatmul.mubr.f32.gmra.mrb[0].mxu0 %v865
        %v1006 = vpop.f32.mrb[0].mxu0
        %v1007 = vadd.f32 %v893, %v1006
        %v1008 = vpop.f32.mrb[0].mxu0
        %1009 = vmatprep.mubr.f32.mxu0 0.0
        %1010 = vmatmul.mubr.f32.gmra.mrb[0].mxu0 %v866
        %v1011 = vpop.f32.mrb[0].mxu0
        %v1012 = vadd.f32 %v893, %v1011
        %v1013 = vpop.f32.mrb[0].mxu0
        %1014 = vmatprep.mubr.f32.mxu0 0.0
        %1015 = vmatmul.mubr.f32.gmra.mrb[0].mxu0 %v867
        %v1016 = vpop.f32.mrb[0].mxu0
        %v1017 = vadd.f32 %v893, %v1016
        %v1018 = vpop.f32.mrb[0].mxu0
        %1019 = vmatprep.mubr.f32.mxu0 0.0
        %1020 = vmatmul.mubr.f32.gmra.mrb[0].mxu0 %v868
        %v1021 = vpop.f32.mrb[0].mxu0
        %v1022 = vadd.f32 %v893, %v1021
        %v1023 = vpop.f32.mrb[0].mxu0
        %1024 = vmatprep.mubr.f32.mxu0 0.0
        %1025 = vmatmul.mubr.f32.gmra.mrb[0].mxu0 %v869
        %v1026 = vpop.f32.mrb[0].mxu0
        %v1027 = vadd.f32 %v893, %v1026
        %v1028 = vpop.f32.mrb[0].mxu0
        %1029 = vmatprep.mubr.f32.mxu0 0.0
        %1030 = vmatmul.mubr.f32.gmra.mrb[0].mxu0 %v870
        %v1031 = vpop.f32.mrb[0].mxu0
        %v1032 = vadd.f32 %v893, %v1031
        %v1033 = vpop.f32.mrb[0].mxu0
        %1034 = vmatprep.mubr.f32.mxu0 0.0
        %1035 = vmatmul.mubr.f32.gmra.mrb[0].mxu0 %v871
        %v1036 = vpop.f32.mrb[0].mxu0
        %v1037 = vadd.f32 %v893, %v1036
        %v1038 = vpop.f32.mrb[0].mxu0
        %1039 = vdwg.mxu0
        %v1040 = vmax.f32 %v962, 0.0
        %v1041 = vmax.f32 %v967, 0.0
        %v1042 = vmax.f32 %v972, 0.0
        %v1043 = vmax.f32 %v977, 0.0
        %v1044 = vmax.f32 %v982, 0.0
        %v1045 = vmax.f32 %v987, 0.0
        %v1046 = vmax.f32 %v992, 0.0
        %v1047 = vmax.f32 %v997, 0.0
        %v1048 = vmax.f32 %v1002, 0.0
        %v1049 = vmax.f32 %v1007, 0.0
        %v1050 = vmax.f32 %v1012, 0.0
        %v1051 = vmax.f32 %v1017, 0.0
        %v1052 = vmax.f32 %v1022, 0.0
        %v1053 = vmax.f32 %v1027, 0.0
        %v1054 = vmax.f32 %v1032, 0.0
        %v1055 = vmax.f32 %v1037, 0.0
        %v1056 = vld [vmem:[%s4] sm:$0xff]
        %v1057 = vld [vmem:[%s4 + $0x8] sm:$0xff]
        %v1058 = vld [vmem:[%s4 + $0x10] sm:$0xff]
        %v1059 = vld [vmem:[%s4 + $0x18] sm:$0xff]
        %v1060 = vld [vmem:[%s4 + $0x20] sm:$0xff]
        %v1061 = vld [vmem:[%s4 + $0x28] sm:$0xff]
        %v1062 = vld [vmem:[%s4 + $0x30] sm:$0xff]
        %v1063 = vld [vmem:[%s4 + $0x38] sm:$0xff]
        %v1064 = vld [vmem:[%s4 + $0x40] sm:$0xff]
        %v1065 = vld [vmem:[%s4 + $0x48] sm:$0xff]
        %v1066 = vld [vmem:[%s4 + $0x50] sm:$0xff]
        %v1067 = vld [vmem:[%s4 + $0x58] sm:$0xff]
        %v1068 = vld [vmem:[%s4 + $0x60] sm:$0xff]
        %v1069 = vld [vmem:[%s4 + $0x68] sm:$0xff]
        %v1070 = vld [vmem:[%s4 + $0x70] sm:$0xff]
        %v1071 = vld [vmem:[%s4 + $0x78] sm:$0xff]
        %v1072 = vld [vmem:[%s5] sm:$0x1]
        %v1074 = vlaneseq
        %v1075 = vshrl.u32 %v1074, 7
        %v1076 = vsub.s32 0, %v1075
        %v1077 = vrot.slane %v1072, %v1076
        %1079 = vmatprep.subr.mxu0 0.0
        %1080 = vmatpush1.msra.mxu0 %v1056
        %1081 = vmatprep.subr.mxu0 0.0
        %1082 = vmatpush1.msra.mxu0 %v1057
        %1083 = vmatprep.subr.mxu0 0.0
        %1084 = vmatpush1.msra.mxu0 %v1058
        %1085 = vmatprep.subr.mxu0 0.0
        %1086 = vmatpush1.msra.mxu0 %v1059
        %1087 = vmatprep.subr.mxu0 0.0
        %1088 = vmatpush1.msra.mxu0 %v1060
        %1089 = vmatprep.subr.mxu0 0.0
        %1090 = vmatpush1.msra.mxu0 %v1061
        %1091 = vmatprep.subr.mxu0 0.0
        %1092 = vmatpush1.msra.mxu0 %v1062
        %1093 = vmatprep.subr.mxu0 0.0
        %1094 = vmatpush1.msra.mxu0 %v1063
        %1095 = vmatprep.subr.mxu0 0.0
        %1096 = vmatpush1.msra.mxu0 %v1064
        %1097 = vmatprep.subr.mxu0 0.0
        %1098 = vmatpush1.msra.mxu0 %v1065
        %1099 = vmatprep.subr.mxu0 0.0
        %1100 = vmatpush1.msra.mxu0 %v1066
        %1101 = vmatprep.subr.mxu0 0.0
        %1102 = vmatpush1.msra.mxu0 %v1067
        %1103 = vmatprep.subr.mxu0 0.0
        %1104 = vmatpush1.msra.mxu0 %v1068
        %1105 = vmatprep.subr.mxu0 0.0
        %1106 = vmatpush1.msra.mxu0 %v1069
        %1107 = vmatprep.subr.mxu0 0.0
        %1108 = vmatpush1.msra.mxu0 %v1070
        %1109 = vmatprep.subr.mxu0 0.0
        %1110 = vmatpush1.msra.mxu0 %v1071
        %1111 = vmatprep.subr.mxu0 0.0
        %1112 = vmatpush1.msra.mxu0 0.0
        %1113 = vmatprep.subr.mxu0 0.0
        %1114 = vmatpush1.msra.mxu0 0.0
        %1115 = vmatprep.subr.mxu0 0.0
        %1116 = vmatpush1.msra.mxu0 0.0
        %1117 = vmatprep.subr.mxu0 0.0
        %1118 = vmatpush1.msra.mxu0 0.0
        %1119 = vmatprep.subr.mxu0 0.0
        %1120 = vmatpush1.msra.mxu0 0.0
        %1121 = vmatprep.subr.mxu0 0.0
        %1122 = vmatpush1.msra.mxu0 0.0
        %1123 = vmatprep.subr.mxu0 0.0
        %1124 = vmatpush1.msra.mxu0 0.0
        %1125 = vmatprep.subr.mxu0 0.0
        %1126 = vmatpush1.msra.mxu0 0.0
        %1127 = vmatprep.subr.mxu0 0.0
        %1128 = vmatpush1.msra.mxu0 0.0
        %1129 = vmatprep.subr.mxu0 0.0
        %1130 = vmatpush1.msra.mxu0 0.0
        %1131 = vmatprep.subr.mxu0 0.0
        %1132 = vmatpush1.msra.mxu0 0.0
        %1133 = vmatprep.subr.mxu0 0.0
        %1134 = vmatpush1.msra.mxu0 0.0
        %1135 = vmatprep.subr.mxu0 0.0
        %1136 = vmatpush1.msra.mxu0 0.0
        %1137 = vmatprep.subr.mxu0 0.0
        %1138 = vmatpush1.msra.mxu0 0.0
        %1139 = vmatprep.subr.mxu0 0.0
        %1140 = vmatpush1.msra.mxu0 0.0
        %1141 = vmatprep.subr.mxu0 0.0
        %1142 = vmatpush1.msra.mxu0 0.0
        %1143 = vmatprep.mubr.f32.mxu0 0.0
        %1144 = vmatmul.mubr.f32.gmra.mrb[0].mxu0 %v1040
        %v1145 = vpop.f32.mrb[0].mxu0
        %v1146 = vadd.f32 %v1077, %v1145
        %v1147 = vpop.f32.mrb[0].mxu0
        %1148 = vmatprep.mubr.f32.mxu0 0.0
        %1149 = vmatmul.mubr.f32.gmra.mrb[0].mxu0 %v1041
        %v1150 = vpop.f32.mrb[0].mxu0
        %v1151 = vadd.f32 %v1077, %v1150
        %v1152 = vpop.f32.mrb[0].mxu0
        %1153 = vmatprep.mubr.f32.mxu0 0.0
        %1154 = vmatmul.mubr.f32.gmra.mrb[0].mxu0 %v1042
        %v1155 = vpop.f32.mrb[0].mxu0
        %v1156 = vadd.f32 %v1077, %v1155
        %v1157 = vpop.f32.mrb[0].mxu0
        %1158 = vmatprep.mubr.f32.mxu0 0.0
        %1159 = vmatmul.mubr.f32.gmra.mrb[0].mxu0 %v1043
        %v1160 = vpop.f32.mrb[0].mxu0
        %v1161 = vadd.f32 %v1077, %v1160
        %v1162 = vpop.f32.mrb[0].mxu0
        %1163 = vmatprep.mubr.f32.mxu0 0.0
        %1164 = vmatmul.mubr.f32.gmra.mrb[0].mxu0 %v1044
        %v1165 = vpop.f32.mrb[0].mxu0
        %v1166 = vadd.f32 %v1077, %v1165
        %v1167 = vpop.f32.mrb[0].mxu0
        %1168 = vmatprep.mubr.f32.mxu0 0.0
        %1169 = vmatmul.mubr.f32.gmra.mrb[0].mxu0 %v1045
        %v1170 = vpop.f32.mrb[0].mxu0
        %v1171 = vadd.f32 %v1077, %v1170
        %v1172 = vpop.f32.mrb[0].mxu0
        %1173 = vmatprep.mubr.f32.mxu0 0.0
        %1174 = vmatmul.mubr.f32.gmra.mrb[0].mxu0 %v1046
        %v1175 = vpop.f32.mrb[0].mxu0
        %v1176 = vadd.f32 %v1077, %v1175
        %v1177 = vpop.f32.mrb[0].mxu0
        %1178 = vmatprep.mubr.f32.mxu0 0.0
        %1179 = vmatmul.mubr.f32.gmra.mrb[0].mxu0 %v1047
        %v1180 = vpop.f32.mrb[0].mxu0
        %v1181 = vadd.f32 %v1077, %v1180
        %v1182 = vpop.f32.mrb[0].mxu0
        %1183 = vmatprep.mubr.f32.mxu0 0.0
        %1184 = vmatmul.mubr.f32.gmra.mrb[0].mxu0 %v1048
        %v1185 = vpop.f32.mrb[0].mxu0
        %v1186 = vadd.f32 %v1077, %v1185
        %v1187 = vpop.f32.mrb[0].mxu0
        %1188 = vmatprep.mubr.f32.mxu0 0.0
        %1189 = vmatmul.mubr.f32.gmra.mrb[0].mxu0 %v1049
        %v1190 = vpop.f32.mrb[0].mxu0
        %v1191 = vadd.f32 %v1077, %v1190
        %v1192 = vpop.f32.mrb[0].mxu0
        %1193 = vmatprep.mubr.f32.mxu0 0.0
        %1194 = vmatmul.mubr.f32.gmra.mrb[0].mxu0 %v1050
        %v1195 = vpop.f32.mrb[0].mxu0
        %v1196 = vadd.f32 %v1077, %v1195
        %v1197 = vpop.f32.mrb[0].mxu0
        %1198 = vmatprep.mubr.f32.mxu0 0.0
        %1199 = vmatmul.mubr.f32.gmra.mrb[0].mxu0 %v1051
        %v1200 = vpop.f32.mrb[0].mxu0
        %v1201 = vadd.f32 %v1077, %v1200
        %v1202 = vpop.f32.mrb[0].mxu0
        %1203 = vmatprep.mubr.f32.mxu0 0.0
        %1204 = vmatmul.mubr.f32.gmra.mrb[0].mxu0 %v1052
        %v1205 = vpop.f32.mrb[0].mxu0
        %v1206 = vadd.f32 %v1077, %v1205
        %v1207 = vpop.f32.mrb[0].mxu0
        %1208 = vmatprep.mubr.f32.mxu0 0.0
        %1209 = vmatmul.mubr.f32.gmra.mrb[0].mxu0 %v1053
        %v1210 = vpop.f32.mrb[0].mxu0
        %v1211 = vadd.f32 %v1077, %v1210
        %v1212 = vpop.f32.mrb[0].mxu0
        %1213 = vmatprep.mubr.f32.mxu0 0.0
        %1214 = vmatmul.mubr.f32.gmra.mrb[0].mxu0 %v1054
        %v1215 = vpop.f32.mrb[0].mxu0
        %v1216 = vadd.f32 %v1077, %v1215
        %v1217 = vpop.f32.mrb[0].mxu0
        %1218 = vmatprep.mubr.f32.mxu0 0.0
        %1219 = vmatmul.mubr.f32.gmra.mrb[0].mxu0 %v1055
        %v1220 = vpop.f32.mrb[0].mxu0
        %v1221 = vadd.f32 %v1077, %v1220
        %v1222 = vpop.f32.mrb[0].mxu0
        %1223 = vdwg.mxu0
        %1224 = vst [vmem:[%s261] sm:$0xff] %v1146
        %1225 = vst [vmem:[%s261 + $0x8] sm:$0xff] %v1151
        %1226 = vst [vmem:[%s261 + $0x10] sm:$0xff] %v1156
        %1227 = vst [vmem:[%s261 + $0x18] sm:$0xff] %v1161
        %1228 = vst [vmem:[%s261 + $0x20] sm:$0xff] %v1166
        %1229 = vst [vmem:[%s261 + $0x28] sm:$0xff] %v1171
        %1230 = vst [vmem:[%s261 + $0x30] sm:$0xff] %v1176
        %1231 = vst [vmem:[%s261 + $0x38] sm:$0xff] %v1181
        %1232 = vst [vmem:[%s261 + $0x40] sm:$0xff] %v1186
        %1233 = vst [vmem:[%s261 + $0x48] sm:$0xff] %v1191
        %1234 = vst [vmem:[%s261 + $0x50] sm:$0xff] %v1196
        %1235 = vst [vmem:[%s261 + $0x58] sm:$0xff] %v1201
        %1236 = vst [vmem:[%s261 + $0x60] sm:$0xff] %v1206
        %1237 = vst [vmem:[%s261 + $0x68] sm:$0xff] %v1211
        %1238 = vst [vmem:[%s261 + $0x70] sm:$0xff] %v1216
        %1239 = vst [vmem:[%s261 + $0x78] sm:$0xff] %v1221
        %s1240 = sand.u32 %s164, 1
        %s1241 = scalar_lea.sflag [#allocation3], %s1240
        %s1242 = sand.u32 %s164, 1
        %s1243 = smul.addr %s1242, 128
        %s1244 = scalar_lea.vmem [#allocation2], %s1243
        // Predicated region
        $region45: #{tpu_custom_call.1} parent=43 // pred_check
          %p1245 = pneg %p174
        $region46: #{tpu_custom_call.1} parent=43 // pred_check_branch
          %1247 = sbr.rel (%p1245) target = $region48
        $region47: #{tpu_custom_call.1} parent=43 // pred_region
          %s1248 = smul.u32 16, %s20
          %s1250 = ssub.s32 2048, 2048
          %1251 = vsyncadd %s1241, %s1250
          %s1252 = smul.addr %s1248, 128
          %s1253 = scalar_lea.hbm %s6, %s1252
          %s1254 = sshll.u32 %s1244, 4
          %s1255 = int_to_ptr.vmem [resolvable:$true] %s1254
          %1260 = dma.vmem_to_hbm [thread:$0]  %s1255, 2048, %s1253, %s1241, 128, 128, 8
        $region48: #{tpu_custom_call.1} parent=43 // pred_fallthru
          _
      $region44: #{tpu_custom_call.1} parent=5 // pred_fallthru
        _
      %p1261 = scmp.le.s32.totalorder 2, %s15
      // Predicated region
      $region49: #{tpu_custom_call.1} parent=5 // pred_check
        %p1262 = pneg %p1261
      $region50: #{tpu_custom_call.1} parent=5 // pred_check_branch
        %1264 = sbr.rel (%p1262) target = $region52
      $region51: #{tpu_custom_call.1} parent=5 // pred_region
        %s1265 = ssub.s32 %s15, 2
        // Predicated region
        $region53: #{tpu_custom_call.1} parent=51 // pred_check
          %p1266 = pneg %p180
        $region54: #{tpu_custom_call.1} parent=51 // pred_check_branch
          %1268 = sbr.rel (%p1266) target = $region56
        $region55: #{tpu_custom_call.1} parent=51 // pred_region
          %s1269 = sand.u32 %s165, 1
          %s1270 = scalar_lea.sflag [#allocation3], %s1269
          %s1271 = sand.u32 %s165, 1
          %s1272 = smul.addr %s1271, 128
          %s1273 = scalar_lea.vmem [#allocation2], %s1272
          %1274 = dma.done %s1270, 2048
        $region56: #{tpu_custom_call.1} parent=51 // pred_fallthru
          _
      $region52: #{tpu_custom_call.1} parent=5 // pred_fallthru
        _
    $region6: #{tpu_custom_call.1} parent=1 // loop_footer
      %s19 = sadd.s32 1, %s15
    $region7: #{tpu_custom_call.1} parent=1 // loop_footer_branch
      %14 = sbr.rel target = $region3
    $region8: #{tpu_custom_call.1} parent=1 // loop_exit
      _
    %1275 = vsyncpa [#allocation3], 1
    %s1276 = scalar_lea.sflag [#allocation3], 1
    %1277 = vsyncpa %s1276, 1

</llo_original>
